<compile_context>
chip_gen: v7x
topology: tpu7x:2x2x1
jax: 0.10.0
libtpu: 0.0.40
codegen_flags: <defaults>
</compile_context>

<pallas_src>
import math

import numpy as np
import jax
import jax.numpy as jnp
from jax.experimental import pallas as pl
from jax.experimental.pallas import tpu as pltpu

_LANE = 128
_TL_CAP = 4096                       # max lanes per L tile (16 KiB/row for f32)
_FAST_PATH_BYTES = 4 * 1024 * 1024   # below this, plain XLA reduce wins


def _vmem_capacity_bytes():
    """Per-core VMEM capacity; conservative (v7x, 64 MiB) fallback."""
    try:
        cap = int(getattr(pltpu.get_tpu_info(), "vmem_capacity_bytes", 0))
        if cap > 0:
            return cap
    except Exception:  # any query failure -> conservative default
        pass
    return 64 * 1024 * 1024


def _min_fill(dtype):
    """Identity element for max: -inf when the format has it, else type min."""
    dtype = jnp.dtype(dtype)
    if jnp.issubdtype(dtype, jnp.floating):
        cast = float(np.asarray(-np.inf).astype(dtype))  # nan/saturates if no inf
        if math.isinf(cast):
            return float("-inf")
        return float(jnp.finfo(dtype).min)
    return int(jnp.iinfo(dtype).min)


def _sublane(itemsize):
    return max(8, 32 // itemsize)    # 8 f32, 16 bf16, 32 int8


def _pick_tiles(r, l, itemsize):
    """Byte-budgeted (TM, TL): keep each pipeline buffer at ~8-12 MiB."""
    cap = _vmem_capacity_bytes()
    per_buf = min(12 * 1024 * 1024, cap // 8)   # ~12 MiB on 128 MiB parts, 8 MiB on v7x
    sub = _sublane(itemsize)
    tl = l if l <= _TL_CAP else _TL_CAP          # full-dim block or 128-multiple cap
    tl_padded = -(-tl // _LANE) * _LANE
    # Per-row VMEM: input tile row + lane-padded (TM,1)->(TM,128) output row.
    row_bytes = (tl_padded + _LANE) * itemsize
    tm = per_buf // row_bytes
    tm = max(sub, (tm // sub) * sub)             # multiple of sublane packing
    r_padded = -(-r // sub) * sub
    tm = min(tm, r_padded)
    return tm, tl


def _vmem_limit_bytes(tm, tl, itemsize):
    cap = _vmem_capacity_bytes()
    tl_padded = -(-tl // _LANE) * _LANE
    used = 2 * tm * (tl_padded + _LANE) * itemsize   # double-buffered in + out
    limit = max(used + 4 * 1024 * 1024, 16 * 1024 * 1024)
    return min(limit, max((cap * 3) // 4, used + 1024 * 1024))


def _validate_tile_len(tile_len, l):
    tl = int(tile_len)
    if tl >= l:
        return l
    if tl % _LANE != 0:
        tl = max(_LANE, (tl // _LANE) * _LANE)   # round down to a 128 multiple
        if tl >= l:
            return l
    return tl


def _validate_tile_rows(tile_rows, r, sub):
    tm = max(sub, (int(tile_rows) // sub) * sub)  # round down to sublane multiple
    r_padded = -(-r // sub) * sub
    return min(tm, r_padded)


def _make_kernel(l, tm, tl, dtype):
    n_lb = -(-l // tl)          # number of L blocks
    l_rem = l % tl              # valid lanes in the last L block (0 == exact)
    fill_value = _min_fill(dtype)

    def _fold_max(x):
        # VPU pass: fold 128-lane strips with vreg-vs-vreg maxima (static,
        # vreg-aligned slices), then one XLU lane-reduce per row.
        if tl % _LANE == 0 and tl > _LANE:
            acc = x[:, :_LANE]
            for j in range(1, tl // _LANE):
                acc = jnp.maximum(acc, x[:, j * _LANE:(j + 1) * _LANE])
        else:
            acc = x
        return jnp.max(acc, axis=-1, keepdims=True)   # (tm, 1)

    def kernel(x_ref, o_ref):
        k = pl.program_id(1)

        def emit(partial):
            @pl.when(k == 0)
            def _():
                o_ref[...] = partial

            @pl.when(k > 0)
            def _():
                o_ref[...] = jnp.maximum(o_ref[...], partial)

        if n_lb == 1:
            # Single (possibly full-dim, non-128-multiple) L block: Mosaic
            # masks padded lanes in the logical-shape reduce.
            o_ref[...] = _fold_max(x_ref[...])
            return

        if l_rem == 0:
            emit(_fold_max(x_ref[...]))
        else:
            # Hot L blocks: bare max-fold, no masking work.
            @pl.when(k < n_lb - 1)
            def _():
                emit(_fold_max(x_ref[...]))

            # Only the last L block pays the iota/compare/select for the
            # out-of-range lanes (stale VMEM past column `l`).
            @pl.when(k == n_lb - 1)
            def _():
                lane = jax.lax.broadcasted_iota(jnp.int32, (tm, tl), 1)
                fill = jnp.asarray(fill_value, dtype)
                xm = jnp.where(lane < l_rem, x_ref[...], fill)
                # n_lb >= 2 here, so k >= 1 and o_ref is already initialized.
                o_ref[...] = jnp.maximum(o_ref[...], _fold_max(xm))

    return kernel


def global_max_pool1d(x, *, force_pallas=False, tile_rows=None, tile_len=None):
    """x: (N, C, L) -> (N, C, 1), max over the last axis (PyTorch layout)."""
    n, c, l = x.shape
    nbytes = x.size * x.dtype.itemsize

    # Small / short-L fast path: XLA's fused reduce beats Pallas launch +
    # per-step overhead, and L < 128 wastes most of every vreg/VMEM row.
    if not force_pallas and (nbytes < _FAST_PATH_BYTES or l < _LANE):
        return jnp.max(x, axis=-1, keepdims=True)

    r = n * c
    xr = x.reshape(r, l)                      # free: contiguous view
    itemsize = x.dtype.itemsize
    sub = _sublane(itemsize)

    tm, tl = _pick_tiles(r, l, itemsize)
    if tile_len is not None:
        tl = _validate_tile_len(tile_len, l)
    if tile_rows is not None:
        tm = _validate_tile_rows(tile_rows, r, sub)

    n_rb = pl.cdiv(r, tm)
    n_lb = pl.cdiv(l, tl)

    out = pl.pallas_call(
        _make_kernel(l, tm, tl, x.dtype),
        out_shape=jax.ShapeDtypeStruct((n_rb * tm, 1), x.dtype),
        grid_spec=pltpu.PrefetchScalarGridSpec(
            num_scalar_prefetch=0,
            grid=(n_rb, n_lb),                                     # reduction axis last
            in_specs=[pl.BlockSpec((tm, tl), lambda i, k: (i, k))],
            out_specs=pl.BlockSpec((tm, 1), lambda i, k: (i, 0)),  # resident over k
        ),
        compiler_params=pltpu.CompilerParams(
            dimension_semantics=("parallel", "arbitrary"),
            vmem_limit_bytes=_vmem_limit_bytes(tm, tl, itemsize),
        ),
    )(xr)

    # Padded rows (ragged last row block) are discarded here; never consume
    # the raw (n_rb*tm, 1) output directly.
    return out[:r].reshape(n, c, 1)


if __name__ == "__main__":
    key = jax.random.PRNGKey(0)

    # Primary example: (N=2, C=4, L=16), F.max_pool1d's (N, C, L) layout.
    # force_pallas=True so the Pallas kernel itself is exercised at this size.
    x = jax.random.normal(key, (2, 4, 16), dtype=jnp.float32)
    out = jax.block_until_ready(global_max_pool1d(x, force_pallas=True))
    ref = jnp.max(x, axis=-1, keepdims=True)
    assert out.shape == (2, 4, 1), out.shape
    assert jnp.allclose(out, ref), "mismatch vs reference (primary)"

    # Default path (small-problem XLA fast path).
    out_fast = jax.block_until_ready(global_max_pool1d(x))
    assert jnp.allclose(out_fast, ref), "mismatch vs reference (fast path)"

    # Stress the tiled paths at small sizes via (validated) tile overrides:
    #   (a) multi-block L with masked remainder (gated last-block mask path),
    #   (b) ragged last row block (R not a multiple of TM),
    #   (c) full-dim L block with L not a multiple of 128 (padded-lane reduce),
    #   (d) bf16, multi-block L with exact tiling (unmasked accumulator path).
    extra_cases = [
        ((2, 12, 300), jnp.float32, dict(tile_rows=8, tile_len=128)),
        ((2, 5, 64), jnp.float32, dict(tile_rows=8, tile_len=64)),
        ((2, 8, 130), jnp.float32, dict()),
        ((2, 16, 256), jnp.bfloat16, dict(tile_rows=16, tile_len=128)),
    ]
    for i, (shape, dt, tiles) in enumerate(extra_cases):
        k = jax.random.fold_in(key, i + 1)
        xi = jax.random.normal(k, shape, dtype=dt)
        oi = jax.block_until_ready(
            global_max_pool1d(xi, force_pallas=True, **tiles))
        ri = jnp.max(xi, axis=-1, keepdims=True)
        assert oi.shape == (shape[0], shape[1], 1), oi.shape
        assert jnp.allclose(oi, ri), f"mismatch vs reference (case {i})"

    print("KERNEL_OK")
</pallas_src>

<mosaic_0001>
module attributes {stable_mosaic.version = 11 : i64} {
  func.func @kernel(%arg0: i32, %arg1: i32, %arg2: memref<8x16xf32, #tpu.memory_space<vmem>>, %arg3: memref<8x1xf32, #tpu.memory_space<vmem>>) attributes {dimension_semantics = [#tpu.dimension_semantics<parallel>, #tpu.dimension_semantics<arbitrary>], iteration_bounds = array<i64: 1, 1>, scalar_prefetch = 0 : i64, scratch_operands = 0 : i64, tpu.core_type = #tpu.core_type<tc>, window_params = [{transform_indices = @transform_0, window_bounds = array<i64: 8, 16>}, {transform_indices = @transform_1, window_bounds = array<i64: 8, 1>}]} {
    %c0 = arith.constant 0 : index
    %c0_0 = arith.constant 0 : index
    %0 = vector.load %arg2[%c0, %c0_0] : memref<8x16xf32, #tpu.memory_space<vmem>>, vector<8x16xf32>
    %cst = arith.constant dense<0xFF800000> : vector<8xf32>
    %1 = vector.multi_reduction <maximumf>, %0, %cst [1] : vector<8x16xf32> to vector<8xf32>
    %2 = vector.shape_cast %1 : vector<8xf32> to vector<8x1xf32>
    %c0_1 = arith.constant 0 : index
    %c0_2 = arith.constant 0 : index
    %3 = vector.load %arg3[%c0_1, %c0_2] : memref<8x1xf32, #tpu.memory_space<vmem>>, vector<8x1xf32>
    tpu.vector_store %arg3[%c0_1, %c0_2], %2 {strides = array<i32>} : memref<8x1xf32, #tpu.memory_space<vmem>>, vector<8x1xf32>,
    return
  }
  func.func @transform_0(%arg0: i32, %arg1: i32) -> (i32, i32) {
    %c0_i32 = arith.constant 0 : i32
    return %arg0, %arg1 : i32, i32
  }
  func.func @transform_1(%arg0: i32, %arg1: i32) -> (i32, i32) {
    %c0_i32 = arith.constant 0 : i32
    %c0_i32_0 = arith.constant 0 : i32
    return %arg0, %c0_i32 : i32, i32
  }
}

</mosaic_0001>

<llo_original>
// kernel: tpu_custom_call.1
$region0: #{tpu_custom_call.1}
  #allocation0 [shape = 'u32[]', space=smem, size = 0x4, offset = 0x4, fixed_abs, tag = 'smem constant byte address 0x4 - core index']
  #allocation1 [shape = 'u32[144,128]{1,0:T(1,128)}', space=vmem, size = 0x12000, scoped, tag = 'internal scratch']
  %s0 = inlined_call_operand.hbm [shape: f32[8,16], index: 0, kind: input, shape index: {}]
  %s1 = inlined_call_operand.vmem [shape: f32[8,1], index: 1, kind: output, shape index: {}]
  %s2 = sld [smem:[#allocation0]]
  $region18: #{tpu_custom_call.1} parent=0
    _
  %s4 = ssub.s32 1, %s2
  %s5 = scalar_select 0, %s4, %s2
  $region1: #{tpu_custom_call.1} parent=0
    #allocation2 [shape = 'u8[4096]{0}', space=vmem, size = 0x1000, scoped, tag = 'input window, operand 0, single buffered']
    #allocation3 [shape = 's32[1]{0}', space=sflag, size = 0x4, scoped, tag = 'scoped memory for tpu_custom_call.1']
    %6 = vsyncpa [#allocation3], 0
    // Predicated region
    $region2: #{tpu_custom_call.1} parent=1 // pred_check
      _
    $region3: #{tpu_custom_call.1} parent=1 // pred_check_branch
      %8 = sbr.rel (0) target = $region5
    $region4: #{tpu_custom_call.1} parent=1 // pred_region
      %s10 = ssub.s32 128, 128
      %11 = vsyncadd [#allocation3], %s10
      %s13 = sshll.u32 [#allocation2], 4
      %s14 = int_to_ptr.vmem [resolvable:$true] %s13
      %16 = dma.hbm_to_vmem [thread:$0]  %s0, 128, %s14, [#allocation3]
    $region5: #{tpu_custom_call.1} parent=1 // pred_fallthru
      _
    // Predicated region
    $region6: #{tpu_custom_call.1} parent=1 // pred_check
      _
    $region7: #{tpu_custom_call.1} parent=1 // pred_check_branch
      %18 = sbr.rel (0) target = $region9
    $region8: #{tpu_custom_call.1} parent=1 // pred_region
      %19 = dma.done [#allocation3], 128
    $region9: #{tpu_custom_call.1} parent=1 // pred_fallthru
      _
    %v20 = vld [vmem:[#allocation2] sm:$0xff]
    %vm21 = vcmask 130048
    %v22 = vsel %vm21, %v20, -inf
    %23 = vmax.xlane.f32.xlu0 %v22
    %v24 = vpop.xlane.xlu0 %23
    %vm25 = vcmask 7168
    %26 = vst.msk [vmem:[%s1] sm:$0xff] %vm25, %v24
    // Predicated region
    $region10: #{tpu_custom_call.1} parent=1 // pred_check
      _
    $region11: #{tpu_custom_call.1} parent=1 // pred_check_branch
      %28 = sbr.rel (0) target = $region13
    $region12: #{tpu_custom_call.1} parent=1 // pred_region
      _
    $region13: #{tpu_custom_call.1} parent=1 // pred_fallthru
      _
    // Predicated region
    $region14: #{tpu_custom_call.1} parent=1 // pred_check
      _
    $region15: #{tpu_custom_call.1} parent=1 // pred_check_branch
      %30 = sbr.rel (0) target = $region17
    $region16: #{tpu_custom_call.1} parent=1 // pred_region
      _
    $region17: #{tpu_custom_call.1} parent=1 // pred_fallthru
      _
    %31 = vsyncpa [#allocation3], 1

</llo_original>
